<compile_context>
chip_gen: v6e
topology: v6e:2x2x1
jax: 0.10.0
libtpu: 0.0.40
codegen_flags: <defaults>
</compile_context>

<pallas_src>
import functools

import jax
import jax.numpy as jnp
from jax.experimental import pallas as pl
from jax.experimental.pallas import tpu as pltpu


def _rmsnorm_kernel(x_ref, w_ref, o_ref, *, eps: float, inv_dim: float,
                    low_precision_scale: bool):
    # x_ref: (ROW_TILE, DIM), w_ref: (1, DIM), o_ref: (ROW_TILE, DIM)
    x = x_ref[...]
    xf = x.astype(jnp.float32)
    # Sum-of-squares over the lane axis (XLU), scaled by a constant 1/dim
    # (VALU mul, cheaper than a divide); rsqrt goes to the EUP slot.
    ms = jnp.sum(xf * xf, axis=-1, keepdims=True) * inv_dim
    norm = jax.lax.rsqrt(ms + eps)                       # f32, (ROW_TILE, 1)
    if low_precision_scale:
        # bf16-capable VPU (v6e/v7x): final scaling in the input dtype.
        nb = norm.astype(x.dtype)
        o_ref[...] = ((x * nb) * w_ref[...].astype(x.dtype)).astype(o_ref.dtype)
    else:
        w = w_ref[...].astype(jnp.float32)               # (1, DIM) broadcast
        o_ref[...] = (w * (xf * norm)).astype(o_ref.dtype)


def _vmem_capacity_bytes() -> int:
    """Per-TensorCore VMEM capacity; conservative fallback if query fails."""
    cap = None
    try:
        cap = int(pltpu.get_tpu_info().vmem_capacity_bytes)
    except Exception:
        cap = None
    if not cap or cap <= 0:
        cap = 64 << 20                                   # v7x per-TC (smallest modern)
    try:
        kind = jax.devices()[0].device_kind.lower()
        if "v7" in kind:                                 # guard against per-chip report
            cap = min(cap, 64 << 20)
    except Exception:
        pass
    return cap


def _num_tensorcores_per_device() -> int:
    try:
        kind = jax.devices()[0].device_kind.lower()
    except Exception:
        return 2
    single_tc = ("v5e" in kind or "v5 lite" in kind or "v5litepod" in kind
                 or "v6e" in kind or "v6 lite" in kind or "trillium" in kind)
    return 1 if single_tc else 2          # v4/v5p megacore, v7x dual-TC -> 2


def _has_fast_low_precision_vpu() -> bool:
    try:
        kind = jax.devices()[0].device_kind.lower()
    except Exception:
        return False
    return ("v6" in kind) or ("v7" in kind) or ("trillium" in kind)


def _choose_row_tile(rows: int, dim: int, itemsize: int,
                     vmem_bytes: int, num_cores: int) -> int:
    """Row tile sized to ~60% of this chip's VMEM (double buffers + f32 temps),
    dtype-packed, with a megacore/pipelining minimum-step heuristic."""
    pack = {4: 8, 2: 16, 1: 32}.get(itemsize, 8)
    row_bytes = dim * itemsize

    # Per-element footprint: 2x(in)+2x(out) double buffers + ~2 f32 intermediates.
    per_elem = 4 * itemsize + 8
    budget = int(0.60 * vmem_bytes) - (4 << 20)
    rt = max(pack, (budget // (dim * per_elem)) // pack * pack)

    # Never larger than the (pack-rounded) problem itself.
    rows_packed = pl.cdiv(rows, pack) * pack
    rt = max(pack, min(rt, rows_packed))

    # Prefer >= 4 grid steps (2 TCs x >= 2 each) so BlockSpec pipelining can
    # overlap DMA, as long as the input tile stays >= ~4 MiB. Single-TC chips
    # (v5e/v6e) skip this: halving the tile there only adds per-step overhead.
    if num_cores >= 2 and rows_packed > pack:
        min_steps = 4
        min_tile_rows = max(pack, ((4 << 20) // row_bytes) // pack * pack)
        rt_for_steps = max(pack, (rows_packed // min_steps) // pack * pack)
        if rt_for_steps < rt:
            rt = max(rt_for_steps, min(rt, min_tile_rows))
    return rt


def rmsnorm(x: jax.Array, weight: jax.Array, eps: float = 1e-6,
            row_tile: int | None = None) -> jax.Array:
    """x: [..., dim], weight: [dim]. Returns same shape/dtype as x."""
    orig_shape = x.shape
    dim = orig_shape[-1]
    rows = 1
    for s in orig_shape[:-1]:
        rows *= s

    itemsize = jnp.dtype(x.dtype).itemsize
    vmem_bytes = _vmem_capacity_bytes()
    if row_tile is None:
        row_tile = _choose_row_tile(rows, dim, itemsize, vmem_bytes,
                                    _num_tensorcores_per_device())

    x2d = x.reshape(rows, dim)
    w2d = weight.reshape(1, dim)

    # No pre-padding: the last block may be partial. Out-of-bounds reads in that
    # block see unspecified data (per-row math keeps it contained, possibly
    # producing NaN only in discarded rows) and out-of-bounds writes are masked.
    grid_rows = pl.cdiv(rows, row_tile)

    # VMEM budget for the compiler: 2x(in)+2x(out) double buffers, up to ~3
    # full-tile f32 intermediates, weight, and headroom; capped at 0.85x VMEM.
    tile_bytes = row_tile * dim * itemsize
    f32_tile_bytes = row_tile * dim * 4
    w_bytes = dim * jnp.dtype(weight.dtype).itemsize
    footprint = 4 * tile_bytes + 3 * f32_tile_bytes + 2 * w_bytes + (4 << 20)
    vmem_limit = int(min(int(0.85 * vmem_bytes), max(footprint, 32 << 20)))

    low_precision_scale = (itemsize == 2) and _has_fast_low_precision_vpu()

    kernel = functools.partial(
        _rmsnorm_kernel, eps=float(eps), inv_dim=1.0 / float(dim),
        low_precision_scale=low_precision_scale)

    out = pl.pallas_call(
        kernel,
        out_shape=jax.ShapeDtypeStruct((rows, dim), x.dtype),
        grid_spec=pltpu.PrefetchScalarGridSpec(
            num_scalar_prefetch=0,
            grid=(grid_rows,),
            in_specs=[
                pl.BlockSpec((row_tile, dim), lambda i: (i, 0)),
                pl.BlockSpec((1, dim), lambda i: (0, 0)),
            ],
            out_specs=pl.BlockSpec((row_tile, dim), lambda i: (i, 0)),
        ),
        compiler_params=pltpu.CompilerParams(
            dimension_semantics=("parallel",),
            vmem_limit_bytes=vmem_limit,
        ),
    )(x2d, w2d)

    return out.reshape(orig_shape)


def rmsnorm_ref(x, weight, eps=1e-6):
    xf = x.astype(jnp.float32)
    norm = jax.lax.rsqrt(jnp.mean(xf * xf, axis=-1, keepdims=True) + eps)
    return (weight.astype(jnp.float32) * (xf * norm)).astype(x.dtype)


if __name__ == "__main__":
    key = jax.random.PRNGKey(0)
    batch, seq, dim = 2, 8, 128
    x = jax.random.normal(key, (batch, seq, dim), dtype=jnp.float32)
    # Deterministic parameter init: the module inits weight to ones.
    weight = jnp.ones((dim,), dtype=jnp.float32)

    y = jax.block_until_ready(rmsnorm(x, weight, eps=1e-6))
    y_ref = rmsnorm_ref(x, weight, eps=1e-6)
    assert y.shape == x.shape and y.dtype == x.dtype
    assert jnp.allclose(y, y_ref, atol=1e-5, rtol=1e-5), "mismatch vs reference"

    # Non-divisible row count: exercises the partial-last-block path (no pad/slice).
    x2 = jax.random.normal(jax.random.PRNGKey(1), (3, 5, dim), dtype=jnp.float32)
    y2 = jax.block_until_ready(rmsnorm(x2, weight, eps=1e-6, row_tile=8))
    assert jnp.allclose(y2, rmsnorm_ref(x2, weight), atol=1e-5, rtol=1e-5)

    # bf16 path (mixed-precision final scaling on v6e/v7x; all-f32 elsewhere).
    xb = jax.random.normal(jax.random.PRNGKey(2), (batch, seq, dim)).astype(jnp.bfloat16)
    wb = jnp.ones((dim,), dtype=jnp.bfloat16)
    yb = jax.block_until_ready(rmsnorm(xb, wb, eps=1e-6))
    yb_ref = rmsnorm_ref(xb, wb, eps=1e-6)
    assert yb.shape == xb.shape and yb.dtype == jnp.bfloat16
    assert jnp.allclose(yb.astype(jnp.float32), yb_ref.astype(jnp.float32),
                        atol=3e-2, rtol=3e-2)

    print("KERNEL_OK")
</pallas_src>

<mosaic_0001>
module attributes {stable_mosaic.version = 11 : i64} {
  func.func @_rmsnorm_kernel(%arg0: i32, %arg1: memref<16x128xf32, #tpu.memory_space<vmem>>, %arg2: memref<1x128xf32, #tpu.memory_space<vmem>>, %arg3: memref<16x128xf32, #tpu.memory_space<vmem>>) attributes {dimension_semantics = [#tpu.dimension_semantics<parallel>], iteration_bounds = array<i64: 1>, scalar_prefetch = 0 : i64, scratch_operands = 0 : i64, tpu.core_type = #tpu.core_type<tc>, window_params = [{transform_indices = @transform_0, window_bounds = array<i64: 16, 128>}, {pipeline_mode = #tpu.pipeline_mode<synchronous>, transform_indices = @transform_1, window_bounds = array<i64: 1, 128>}, {transform_indices = @transform_2, window_bounds = array<i64: 16, 128>}]} {
    %c0 = arith.constant 0 : index
    %c0_0 = arith.constant 0 : index
    %0 = vector.load %arg1[%c0, %c0_0] : memref<16x128xf32, #tpu.memory_space<vmem>>, vector<16x128xf32>
    %1 = arith.mulf %0, %0 : vector<16x128xf32>
    %cst = arith.constant dense<0.000000e+00> : vector<16xf32>
    %2 = vector.multi_reduction <add>, %1, %cst [1] : vector<16x128xf32> to vector<16xf32>
    %3 = vector.shape_cast %2 : vector<16xf32> to vector<16x1xf32>
    %cst_1 = arith.constant 7.812500e-03 : f32
    %4 = vector.broadcast %cst_1 : f32 to vector<16x1xf32>
    %5 = arith.mulf %3, %4 : vector<16x1xf32>
    %cst_2 = arith.constant 9.99999997E-7 : f32
    %6 = vector.broadcast %cst_2 : f32 to vector<16x1xf32>
    %7 = arith.addf %5, %6 : vector<16x1xf32>
    %8 = math.rsqrt %7 : vector<16x1xf32>
    %c0_3 = arith.constant 0 : index
    %c0_4 = arith.constant 0 : index
    %9 = vector.load %arg2[%c0_3, %c0_4] : memref<1x128xf32, #tpu.memory_space<vmem>>, vector<1x128xf32>
    %10 = vector.broadcast %8 : vector<16x1xf32> to vector<16x128xf32>
    %11 = arith.mulf %0, %10 : vector<16x128xf32>
    %12 = vector.broadcast %9 : vector<1x128xf32> to vector<16x128xf32>
    %13 = arith.mulf %12, %11 : vector<16x128xf32>
    %c0_5 = arith.constant 0 : index
    %c0_6 = arith.constant 0 : index
    %14 = vector.load %arg3[%c0_5, %c0_6] : memref<16x128xf32, #tpu.memory_space<vmem>>, vector<16x128xf32>
    tpu.vector_store %arg3[%c0_5, %c0_6], %13 {strides = array<i32>} : memref<16x128xf32, #tpu.memory_space<vmem>>, vector<16x128xf32>,
    return
  }
  func.func @transform_0(%arg0: i32) -> (i32, i32) {
    %c0_i32 = arith.constant 0 : i32
    %c0_i32_0 = arith.constant 0 : i32
    return %arg0, %c0_i32 : i32, i32
  }
  func.func @transform_1(%arg0: i32) -> (i32, i32) {
    %c0_i32 = arith.constant 0 : i32
    %c0_i32_0 = arith.constant 0 : i32
    %c0_i32_1 = arith.constant 0 : i32
    return %c0_i32, %c0_i32_0 : i32, i32
  }
  func.func @transform_2(%arg0: i32) -> (i32, i32) {
    %c0_i32 = arith.constant 0 : i32
    %c0_i32_0 = arith.constant 0 : i32
    return %arg0, %c0_i32 : i32, i32
  }
}

</mosaic_0001>

<llo_original>
// kernel: tpu_custom_call.1
$region0: #{tpu_custom_call.1}
  #allocation0 [shape = 'u32[]', space=smem, size = 0x4, offset = 0x4, fixed_abs, tag = 'smem constant byte address 0x4 - core index']
  #allocation1 [shape = 'u32[144,128]{1,0:T(1,128)}', space=vmem, size = 0x12000, scoped, tag = 'internal scratch']
  %s0 = inlined_call_operand.hbm [shape: f32[16,128], index: 0, kind: input, shape index: {}]
  %s1 = inlined_call_operand.vmem [shape: f32[1,128], index: 1, kind: input, shape index: {}]
  %s2 = inlined_call_operand.hbm [shape: f32[16,128], index: 2, kind: output, shape index: {}]
  %s3 = sld [smem:[#allocation0]]
  $region22: #{tpu_custom_call.1} parent=0
    _
  %s5 = ssub.s32 1, %s3
  %s6 = scalar_select 0, %s5, %s3
  $region1: #{tpu_custom_call.1} parent=0
    #allocation2 [shape = 'u8[8192]{0}', space=vmem, size = 0x2000, scoped, tag = 'input window, operand 0, single buffered']
    #allocation3 [shape = 's32[1]{0}', space=sflag, size = 0x4, scoped, tag = 'scoped memory for tpu_custom_call.1']
    #allocation4 [shape = 's32[1]{0}', space=sflag, size = 0x4, scoped, tag = 'scoped memory for tpu_custom_call.1']
    #allocation5 [shape = 'u8[8192]{0}', space=vmem, size = 0x2000, scoped, tag = 'output window, operand 0, single buffered']
    %7 = vsyncpa [#allocation3], 0
    %8 = vsyncpa [#allocation4], 0
    // Predicated region
    $region2: #{tpu_custom_call.1} parent=1 // pred_check
      _
    $region3: #{tpu_custom_call.1} parent=1 // pred_check_branch
      %10 = sbr.rel (0) target = $region5
    $region4: #{tpu_custom_call.1} parent=1 // pred_region
      %s12 = ssub.s32 256, 256
      %13 = vsyncadd [#allocation3], %s12
      %s14 = sshll.u32 [#allocation2], 4
      %s15 = int_to_ptr.vmem [resolvable:$true] %s14
      %20 = dma.hbm_to_vmem [thread:$0]  %s0, 256, %s15, [#allocation3], 128, 128, 8
    $region5: #{tpu_custom_call.1} parent=1 // pred_fallthru
      _
    // Predicated region
    $region6: #{tpu_custom_call.1} parent=1 // pred_check
      _
    $region7: #{tpu_custom_call.1} parent=1 // pred_check_branch
      %22 = sbr.rel (0) target = $region9
    $region8: #{tpu_custom_call.1} parent=1 // pred_region
      _
    $region9: #{tpu_custom_call.1} parent=1 // pred_fallthru
      _
    // Predicated region
    $region10: #{tpu_custom_call.1} parent=1 // pred_check
      _
    $region11: #{tpu_custom_call.1} parent=1 // pred_check_branch
      %24 = sbr.rel (0) target = $region13
    $region12: #{tpu_custom_call.1} parent=1 // pred_region
      %25 = dma.done [#allocation3], 256
    $region13: #{tpu_custom_call.1} parent=1 // pred_fallthru
      _
    %v26 = vld [vmem:[#allocation2] sm:$0xff]
    %v27 = vld [vmem:[#allocation2 + $0x8] sm:$0xff]
    %v28 = vmul.f32 %v26, %v26
    %v29 = vmul.f32 %v27, %v27
    %30 = vadd.xlane.f32.xlu0 %v28
    %v31 = vpop.xlane.xlu0 %30
    %32 = vadd.xlane.f32.xlu0 %v29
    %v33 = vpop.xlane.xlu0 %32
    %v34 = vmul.f32 %v31, 0.0078125
    %v35 = vmul.f32 %v33, 0.0078125
    %v36 = vadd.f32 %v34, 1e-06
    %v37 = vadd.f32 %v35, 1e-06
    %v38 = vrsqrt.pop %v36
    %v39 = vrsqrt.pop %v37
    %v40 = vld [vmem:[%s1] sm:$0x1]
    %v41 = vmul.f32 %v26, %v38
    %v42 = vmul.f32 %v27, %v39
    %v44 = vlaneseq
    %v45 = vshrl.u32 %v44, 7
    %v46 = vsub.s32 0, %v45
    %v47 = vrot.slane %v40, %v46
    %v49 = vmul.f32 %v47, %v41
    %v50 = vmul.f32 %v47, %v42
    %51 = vst [vmem:[#allocation5] sm:$0xff] %v49
    %52 = vst [vmem:[#allocation5 + $0x8] sm:$0xff] %v50
    // Predicated region
    $region14: #{tpu_custom_call.1} parent=1 // pred_check
      _
    $region15: #{tpu_custom_call.1} parent=1 // pred_check_branch
      %54 = sbr.rel (0) target = $region17
    $region16: #{tpu_custom_call.1} parent=1 // pred_region
      %s56 = ssub.s32 256, 256
      %57 = vsyncadd [#allocation4], %s56
      %s58 = sshll.u32 [#allocation5], 4
      %s59 = int_to_ptr.vmem [resolvable:$true] %s58
      %64 = dma.vmem_to_hbm [thread:$0]  %s59, 256, %s2, [#allocation4], 128, 128, 8
    $region17: #{tpu_custom_call.1} parent=1 // pred_fallthru
      _
    // Predicated region
    $region18: #{tpu_custom_call.1} parent=1 // pred_check
      _
    $region19: #{tpu_custom_call.1} parent=1 // pred_check_branch
      %66 = sbr.rel (0) target = $region21
    $region20: #{tpu_custom_call.1} parent=1 // pred_region
      %67 = dma.done [#allocation4], 256
    $region21: #{tpu_custom_call.1} parent=1 // pred_fallthru
      _
    %68 = vsyncpa [#allocation3], 1
    %69 = vsyncpa [#allocation4], 1

</llo_original>
